<compile_context>
chip_gen: v7x
topology: tpu7x:2x2x1
jax: 0.10.0
libtpu: 0.0.40
codegen_flags: <defaults>
</compile_context>

<pallas_src>
import functools
import math

import jax
import jax.numpy as jnp
from jax.experimental import pallas as pl
from jax.experimental.pallas import tpu as pltpu

_MIB = 1024 * 1024


def _round_up(x, m):
    return ((x + m - 1) // m) * m


def _round_down(x, m):
    return (x // m) * m


def _cdiv(a, b):
    return (a + b - 1) // b


def _sublane_pack(dtype):
    # 8 sublanes of 32-bit; sub-32-bit dtypes pack 2x/4x along sublanes.
    itemsize = jnp.dtype(dtype).itemsize
    return 8 * max(1, 4 // itemsize)


def _tpu_config():
    """Per-generation (tile_bytes_f32, vmem_limit_bytes, num_tensorcores).

    tile_bytes_f32 budgets the f32 intermediate footprint of one block; the
    resident VMEM (double-buffered in + out + live f32 temporaries) is
    roughly 5-6x that, kept under the explicit vmem limit.
    """
    try:
        kind = jax.devices()[0].device_kind.lower()
    except Exception:  # pragma: no cover - defensive
        kind = ""
    if "v7" in kind:
        # 64 MiB physical VMEM per TC, 3.2 TB/s HBM, 2 TensorCores.
        return 6 * _MIB, 48 * _MIB, 2
    if "v6" in kind:
        # 128 MiB physical VMEM, most headroom.
        return 8 * _MIB, 64 * _MIB, 1
    if "v5p" in kind or "v4" in kind:
        # Megacore chips, 128 MiB VMEM, 2 TensorCores.
        return 8 * _MIB, 64 * _MIB, 2
    if "v5" in kind:
        # v5e: raise the 16 MiB scoped default explicitly, keep tiles modest.
        return 4 * _MIB, 64 * _MIB, 1
    # Unknown hardware: stay safely under a 16 MiB scoped default.
    return 2 * _MIB, None, 1


def _finish(e, s, out_dtype):
    # EUP approx reciprocal + one Newton step -> ~f32-exact 1/s, VALU-cheap.
    inv = pl.reciprocal(s, approx=True)
    inv = inv * (2.0 - s * inv)
    return (e * inv).astype(out_dtype)


def _softmax_last_kernel(x_ref, o_ref, *, inv_temperature):
    # x_ref: (TM, N); reduction along the lane (last) axis.
    x = x_ref[...].astype(jnp.float32) * inv_temperature
    m = jnp.max(x, axis=-1, keepdims=True)
    e = jnp.exp(x - m)
    s = jnp.sum(e, axis=-1, keepdims=True)
    o_ref[...] = _finish(e, s, o_ref.dtype)


def _softmax_mid_kernel(x_ref, o_ref, *, inv_temperature):
    # x_ref: (TB, C, TL); reduction over the sublane axis (C); the
    # independent trailing dims stay lane-dense.
    x = x_ref[...].astype(jnp.float32) * inv_temperature
    m = jnp.max(x, axis=1, keepdims=True)
    e = jnp.exp(x - m)
    s = jnp.sum(e, axis=1, keepdims=True)
    o_ref[...] = _finish(e, s, o_ref.dtype)


def _softmax_last_axis(x2d, inv_temperature, tile_bytes_f32, vmem_limit, ntc):
    """Softmax over the last axis of a (rows, N) slab; natural layout."""
    rows, n = x2d.shape
    pack = _sublane_pack(x2d.dtype)
    n_eff = _round_up(n, 128)          # lane padding inside VMEM
    cap_elems = tile_bytes_f32 // 4    # f32 elements per block

    if pack * n_eff > cap_elems:
        # TODO(synk): add an N-tiled (two-pass / online-softmax) Pallas kernel
        # for reduction axes too large to fit a single VMEM block.
        return jax.nn.softmax(
            x2d.astype(jnp.float32) * inv_temperature, axis=-1
        ).astype(x2d.dtype)

    tm = max(pack, _round_down(cap_elems // n_eff, pack))
    if tm >= rows:
        tm = rows
    if ntc >= 2 and tm == rows and rows > pack:
        # Split into two balanced tiles so both TensorCores get work.
        tm = max(pack, _round_up(_cdiv(rows, 2), pack))
        if tm >= rows:
            tm = rows

    grid = (_cdiv(rows, tm),)
    kernel = functools.partial(_softmax_last_kernel,
                               inv_temperature=inv_temperature)
    return pl.pallas_call(
        kernel,
        out_shape=jax.ShapeDtypeStruct((rows, n), x2d.dtype),
        grid_spec=pltpu.PrefetchScalarGridSpec(
            num_scalar_prefetch=0,
            grid=grid,
            in_specs=[pl.BlockSpec((tm, n), lambda i: (i, 0))],
            out_specs=pl.BlockSpec((tm, n), lambda i: (i, 0)),
        ),
        compiler_params=pltpu.CompilerParams(
            dimension_semantics=("parallel",),
            vmem_limit_bytes=vmem_limit),
    )(x2d)


def _softmax_mid_axis(x3d, inv_temperature, tile_bytes_f32, vmem_limit, ntc):
    """Softmax over axis=1 of a (B, C, L) slab; no layout copies needed."""
    b, c, l = x3d.shape
    c_eff = _round_up(c, 8)            # sublane padding inside VMEM
    cap_elems = tile_bytes_f32 // 4

    if c_eff * 128 > cap_elems:
        # TODO(synk): C-tiled online-softmax fallback for huge softmax axes.
        return jax.nn.softmax(
            x3d.astype(jnp.float32) * inv_temperature, axis=1
        ).astype(x3d.dtype)

    if l >= 128:
        tl = max(128, _round_down(cap_elems // c_eff, 128))
        if tl >= l:
            tl = l
    else:
        tl = l
    tl_eff = _round_up(tl, 128)
    tb = max(1, cap_elems // (c_eff * tl_eff))
    tb = min(tb, b)

    if ntc >= 2 and _cdiv(b, tb) * _cdiv(l, tl) == 1:
        # Give the second TensorCore a balanced half of the work.
        if l >= 256:
            tl = max(128, _round_up(_cdiv(l, 2), 128))
        elif b >= 2:
            tb = _cdiv(b, 2)

    grid = (_cdiv(b, tb), _cdiv(l, tl))
    kernel = functools.partial(_softmax_mid_kernel,
                               inv_temperature=inv_temperature)
    return pl.pallas_call(
        kernel,
        out_shape=jax.ShapeDtypeStruct((b, c, l), x3d.dtype),
        grid_spec=pltpu.PrefetchScalarGridSpec(
            num_scalar_prefetch=0,
            grid=grid,
            in_specs=[pl.BlockSpec((tb, c, tl), lambda i, j: (i, 0, j))],
            out_specs=pl.BlockSpec((tb, c, tl), lambda i, j: (i, 0, j)),
        ),
        compiler_params=pltpu.CompilerParams(
            dimension_semantics=("parallel", "parallel"),
            vmem_limit_bytes=vmem_limit),
    )(x3d)


def softmax_t(x, temperature=1.0, dim=-1):
    """Pallas equivalent of SoftmaxT.forward: softmax(x / temperature, dim)."""
    ndim = x.ndim
    axis = dim % ndim
    tile_bytes_f32, vmem_limit, ntc = _tpu_config()

    # Temperature is a static constructor constant in the PyTorch module.
    # TODO(synk): a traced/array temperature would need to be passed as an
    # SMEM scalar instead of being baked into the compiled kernel.
    inv_temperature = float(1.0 / temperature)

    if axis == ndim - 1:
        n = x.shape[-1]
        rows = int(math.prod(x.shape[:-1]))
        out2d = _softmax_last_axis(x.reshape(rows, n), inv_temperature,
                                   tile_bytes_f32, vmem_limit, ntc)
        return out2d.reshape(x.shape)

    # dim != last: collapse leading/trailing dims around the softmax axis into
    # (B, C, L) -- a free view, no HBM transpose -- and reduce over sublanes
    # with the independent trailing dims lane-dense.
    b = int(math.prod(x.shape[:axis])) if axis > 0 else 1
    c = x.shape[axis]
    l = int(math.prod(x.shape[axis + 1:]))
    out3d = _softmax_mid_axis(x.reshape(b, c, l), inv_temperature,
                              tile_bytes_f32, vmem_limit, ntc)
    return out3d.reshape(x.shape)


if __name__ == "__main__":
    key = jax.random.PRNGKey(0)
    temperature = 2.0

    def check(x, dim, atol=1e-5):
        out = jax.block_until_ready(
            softmax_t(x, temperature=temperature, dim=dim))
        ref = jax.nn.softmax(
            x.astype(jnp.float32) / temperature, axis=dim).astype(x.dtype)
        assert out.shape == x.shape and out.dtype == x.dtype
        assert jnp.allclose(out.astype(jnp.float32), ref.astype(jnp.float32),
                            atol=atol, rtol=1e-3), (tuple(x.shape), dim)

    k0, k1, k2, k3 = jax.random.split(key, 4)

    # 1) NCHW-like tensor, softmax over the last axis (narrow N=16 path).
    x = jax.random.normal(k0, (2, 4, 16, 16), dtype=jnp.float32)
    check(x, -1)

    # 2) Channel softmax (dim=1) -> native (B, C, L) sublane-reduce path,
    #    zero wrapper-side transposes.
    check(x, 1)

    # 3) Softmax over a middle spatial axis (dim=2, narrow trailing L).
    check(x, 2)

    # 4) Wide lane-reduce path (N = 256 >= 128).
    check(jax.random.normal(k1, (4, 8, 256), dtype=jnp.float32), -1)

    # 5) Odd, non-aligned dims through the last-axis path (ragged edge block
    #    on multi-TensorCore chips).
    check(jax.random.normal(k2, (7, 5, 96), dtype=jnp.float32), -1)

    # 6) dim=0 (B == 1 in the collapsed view), bf16 input.
    check(jax.random.normal(k3, (6, 8, 32), dtype=jnp.bfloat16), 0, atol=2e-2)

    print("KERNEL_OK")
</pallas_src>

<mosaic_0001>
module attributes {stable_mosaic.version = 11 : i64} {
  func.func @_softmax_last_kernel(%arg0: i32, %arg1: memref<128x16xf32, #tpu.memory_space<vmem>>, %arg2: memref<128x16xf32, #tpu.memory_space<vmem>>) attributes {dimension_semantics = [#tpu.dimension_semantics<parallel>], iteration_bounds = array<i64: 1>, scalar_prefetch = 0 : i64, scratch_operands = 0 : i64, tpu.core_type = #tpu.core_type<tc>, window_params = [{transform_indices = @transform_0, window_bounds = array<i64: 128, 16>}, {transform_indices = @transform_1, window_bounds = array<i64: 128, 16>}]} {
    %c0 = arith.constant 0 : index
    %c0_0 = arith.constant 0 : index
    %0 = vector.load %arg1[%c0, %c0_0] : memref<128x16xf32, #tpu.memory_space<vmem>>, vector<128x16xf32>
    %cst = arith.constant 5.000000e-01 : f32
    %1 = vector.broadcast %cst : f32 to vector<128x16xf32>
    %2 = arith.mulf %0, %1 : vector<128x16xf32>
    %cst_1 = arith.constant dense<0xFF800000> : vector<128xf32>
    %3 = vector.multi_reduction <maximumf>, %2, %cst_1 [1] : vector<128x16xf32> to vector<128xf32>
    %4 = vector.shape_cast %3 : vector<128xf32> to vector<128x1xf32>
    %5 = vector.broadcast %4 : vector<128x1xf32> to vector<128x16xf32>
    %6 = arith.subf %2, %5 : vector<128x16xf32>
    %7 = math.exp %6 : vector<128x16xf32>
    %cst_2 = arith.constant dense<0.000000e+00> : vector<128xf32>
    %8 = vector.multi_reduction <add>, %7, %cst_2 [1] : vector<128x16xf32> to vector<128xf32>
    %9 = vector.shape_cast %8 : vector<128xf32> to vector<128x1xf32>
    %10 = tpu.reciprocal %9 {approx = true} : vector<128x1xf32> -> vector<128x1xf32>
    %11 = arith.mulf %9, %10 : vector<128x1xf32>
    %cst_3 = arith.constant 2.000000e+00 : f32
    %12 = vector.broadcast %cst_3 : f32 to vector<128x1xf32>
    %13 = arith.subf %12, %11 : vector<128x1xf32>
    %14 = arith.mulf %10, %13 : vector<128x1xf32>
    %15 = vector.broadcast %14 : vector<128x1xf32> to vector<128x16xf32>
    %16 = arith.mulf %7, %15 : vector<128x16xf32>
    %c0_4 = arith.constant 0 : index
    %c0_5 = arith.constant 0 : index
    %17 = vector.load %arg2[%c0_4, %c0_5] : memref<128x16xf32, #tpu.memory_space<vmem>>, vector<128x16xf32>
    tpu.vector_store %arg2[%c0_4, %c0_5], %16 {strides = array<i32>} : memref<128x16xf32, #tpu.memory_space<vmem>>, vector<128x16xf32>,
    return
  }
  func.func @transform_0(%arg0: i32) -> (i32, i32) {
    %c0_i32 = arith.constant 0 : i32
    %c0_i32_0 = arith.constant 0 : i32
    return %arg0, %c0_i32 : i32, i32
  }
  func.func @transform_1(%arg0: i32) -> (i32, i32) {
    %c0_i32 = arith.constant 0 : i32
    %c0_i32_0 = arith.constant 0 : i32
    return %arg0, %c0_i32 : i32, i32
  }
}

</mosaic_0001>

<llo_original>
// kernel: tpu_custom_call.1
$region0: #{tpu_custom_call.1}
  #allocation0 [shape = 'u32[]', space=smem, size = 0x4, offset = 0x4, fixed_abs, tag = 'smem constant byte address 0x4 - core index']
  #allocation1 [shape = 'u32[144,128]{1,0:T(1,128)}', space=vmem, size = 0x12000, scoped, tag = 'internal scratch']
  %s0 = inlined_call_operand.vmem [shape: f32[128,16], index: 0, kind: input, shape index: {}]
  %s1 = inlined_call_operand.vmem [shape: f32[128,16], index: 1, kind: output, shape index: {}]
  %s2 = sld [smem:[#allocation0]]
  $region14: #{tpu_custom_call.1} parent=0
    _
  %s4 = ssub.s32 1, %s2
  %s5 = scalar_select 0, %s4, %s2
  // Predicated region
  $region2: #{tpu_custom_call.1} parent=0 // pred_check
    _
  $region3: #{tpu_custom_call.1} parent=0 // pred_check_branch
    %7 = sbr.rel (0) target = $region5
  $region4: #{tpu_custom_call.1} parent=0 // pred_region
    _
  $region5: #{tpu_custom_call.1} parent=0 // pred_fallthru
    _
  %v8 = vld [vmem:[%s0] sm:$0xff]
  %v9 = vld [vmem:[%s0 + $0x8] sm:$0xff]
  %v10 = vld [vmem:[%s0 + $0x10] sm:$0xff]
  %v11 = vld [vmem:[%s0 + $0x18] sm:$0xff]
  %v12 = vld [vmem:[%s0 + $0x20] sm:$0xff]
  %v13 = vld [vmem:[%s0 + $0x28] sm:$0xff]
  %v14 = vld [vmem:[%s0 + $0x30] sm:$0xff]
  %v15 = vld [vmem:[%s0 + $0x38] sm:$0xff]
  %v16 = vld [vmem:[%s0 + $0x40] sm:$0xff]
  %v17 = vld [vmem:[%s0 + $0x48] sm:$0xff]
  %v18 = vld [vmem:[%s0 + $0x50] sm:$0xff]
  %v19 = vld [vmem:[%s0 + $0x58] sm:$0xff]
  %v20 = vld [vmem:[%s0 + $0x60] sm:$0xff]
  %v21 = vld [vmem:[%s0 + $0x68] sm:$0xff]
  %v22 = vld [vmem:[%s0 + $0x70] sm:$0xff]
  %v23 = vld [vmem:[%s0 + $0x78] sm:$0xff]
  %v24 = vmul.f32 %v8, 0.5
  %v25 = vmul.f32 %v9, 0.5
  %v26 = vmul.f32 %v10, 0.5
  %v27 = vmul.f32 %v11, 0.5
  %v28 = vmul.f32 %v12, 0.5
  %v29 = vmul.f32 %v13, 0.5
  %v30 = vmul.f32 %v14, 0.5
  %v31 = vmul.f32 %v15, 0.5
  %v32 = vmul.f32 %v16, 0.5
  %v33 = vmul.f32 %v17, 0.5
  %v34 = vmul.f32 %v18, 0.5
  %v35 = vmul.f32 %v19, 0.5
  %v36 = vmul.f32 %v20, 0.5
  %v37 = vmul.f32 %v21, 0.5
  %v38 = vmul.f32 %v22, 0.5
  %v39 = vmul.f32 %v23, 0.5
  %vm40 = vcmask 130048
  %v41 = vsel %vm40, %v24, -inf
  %42 = vmax.xlane.f32.xlu0 %v41
  %v43 = vpop.xlane.xlu0 %42
  %v44 = vsel %vm40, %v25, -inf
  %45 = vmax.xlane.f32.xlu0 %v44
  %v46 = vpop.xlane.xlu0 %45
  %v47 = vsel %vm40, %v26, -inf
  %48 = vmax.xlane.f32.xlu0 %v47
  %v49 = vpop.xlane.xlu0 %48
  %v50 = vsel %vm40, %v27, -inf
  %51 = vmax.xlane.f32.xlu0 %v50
  %v52 = vpop.xlane.xlu0 %51
  %v53 = vsel %vm40, %v28, -inf
  %54 = vmax.xlane.f32.xlu0 %v53
  %v55 = vpop.xlane.xlu0 %54
  %v56 = vsel %vm40, %v29, -inf
  %57 = vmax.xlane.f32.xlu0 %v56
  %v58 = vpop.xlane.xlu0 %57
  %v59 = vsel %vm40, %v30, -inf
  %60 = vmax.xlane.f32.xlu0 %v59
  %v61 = vpop.xlane.xlu0 %60
  %v62 = vsel %vm40, %v31, -inf
  %63 = vmax.xlane.f32.xlu0 %v62
  %v64 = vpop.xlane.xlu0 %63
  %v65 = vsel %vm40, %v32, -inf
  %66 = vmax.xlane.f32.xlu0 %v65
  %v67 = vpop.xlane.xlu0 %66
  %v68 = vsel %vm40, %v33, -inf
  %69 = vmax.xlane.f32.xlu0 %v68
  %v70 = vpop.xlane.xlu0 %69
  %v71 = vsel %vm40, %v34, -inf
  %72 = vmax.xlane.f32.xlu0 %v71
  %v73 = vpop.xlane.xlu0 %72
  %v74 = vsel %vm40, %v35, -inf
  %75 = vmax.xlane.f32.xlu0 %v74
  %v76 = vpop.xlane.xlu0 %75
  %v77 = vsel %vm40, %v36, -inf
  %78 = vmax.xlane.f32.xlu0 %v77
  %v79 = vpop.xlane.xlu0 %78
  %v80 = vsel %vm40, %v37, -inf
  %81 = vmax.xlane.f32.xlu0 %v80
  %v82 = vpop.xlane.xlu0 %81
  %v83 = vsel %vm40, %v38, -inf
  %84 = vmax.xlane.f32.xlu0 %v83
  %v85 = vpop.xlane.xlu0 %84
  %v86 = vsel %vm40, %v39, -inf
  %87 = vmax.xlane.f32.xlu0 %v86
  %v88 = vpop.xlane.xlu0 %87
  %v89 = vsub.f32 %v24, %v43
  %v90 = vsub.f32 %v25, %v46
  %v91 = vsub.f32 %v26, %v49
  %v92 = vsub.f32 %v27, %v52
  %v93 = vsub.f32 %v28, %v55
  %v94 = vsub.f32 %v29, %v58
  %v95 = vsub.f32 %v30, %v61
  %v96 = vsub.f32 %v31, %v64
  %v97 = vsub.f32 %v32, %v67
  %v98 = vsub.f32 %v33, %v70
  %v99 = vsub.f32 %v34, %v73
  %v100 = vsub.f32 %v35, %v76
  %v101 = vsub.f32 %v36, %v79
  %v102 = vsub.f32 %v37, %v82
  %v103 = vsub.f32 %v38, %v85
  %v104 = vsub.f32 %v39, %v88
  %v105 = vmul.f32 %v89, 1.442695
  %v106 = vpow.pop %v105
  %v107 = vmul.f32 %v90, 1.442695
  %v108 = vpow.pop %v107
  %v109 = vmul.f32 %v91, 1.442695
  %v110 = vpow.pop %v109
  %v111 = vmul.f32 %v92, 1.442695
  %v112 = vpow.pop %v111
  %v113 = vmul.f32 %v93, 1.442695
  %v114 = vpow.pop %v113
  %v115 = vmul.f32 %v94, 1.442695
  %v116 = vpow.pop %v115
  %v117 = vmul.f32 %v95, 1.442695
  %v118 = vpow.pop %v117
  %v119 = vmul.f32 %v96, 1.442695
  %v120 = vpow.pop %v119
  %v121 = vmul.f32 %v97, 1.442695
  %v122 = vpow.pop %v121
  %v123 = vmul.f32 %v98, 1.442695
  %v124 = vpow.pop %v123
  %v125 = vmul.f32 %v99, 1.442695
  %v126 = vpow.pop %v125
  %v127 = vmul.f32 %v100, 1.442695
  %v128 = vpow.pop %v127
  %v129 = vmul.f32 %v101, 1.442695
  %v130 = vpow.pop %v129
  %v131 = vmul.f32 %v102, 1.442695
  %v132 = vpow.pop %v131
  %v133 = vmul.f32 %v103, 1.442695
  %v134 = vpow.pop %v133
  %v135 = vmul.f32 %v104, 1.442695
  %v136 = vpow.pop %v135
  %v137 = vsel %vm40, %v106, 0.0
  %138 = vadd.xlane.f32.xlu0 %v137
  %v139 = vpop.xlane.xlu0 %138
  %v140 = vsel %vm40, %v108, 0.0
  %141 = vadd.xlane.f32.xlu0 %v140
  %v142 = vpop.xlane.xlu0 %141
  %v143 = vsel %vm40, %v110, 0.0
  %144 = vadd.xlane.f32.xlu0 %v143
  %v145 = vpop.xlane.xlu0 %144
  %v146 = vsel %vm40, %v112, 0.0
  %147 = vadd.xlane.f32.xlu0 %v146
  %v148 = vpop.xlane.xlu0 %147
  %v149 = vsel %vm40, %v114, 0.0
  %150 = vadd.xlane.f32.xlu0 %v149
  %v151 = vpop.xlane.xlu0 %150
  %v152 = vsel %vm40, %v116, 0.0
  %153 = vadd.xlane.f32.xlu0 %v152
  %v154 = vpop.xlane.xlu0 %153
  %v155 = vsel %vm40, %v118, 0.0
  %156 = vadd.xlane.f32.xlu0 %v155
  %v157 = vpop.xlane.xlu0 %156
  %v158 = vsel %vm40, %v120, 0.0
  %159 = vadd.xlane.f32.xlu0 %v158
  %v160 = vpop.xlane.xlu0 %159
  %v161 = vsel %vm40, %v122, 0.0
  %162 = vadd.xlane.f32.xlu0 %v161
  %v163 = vpop.xlane.xlu0 %162
  %v164 = vsel %vm40, %v124, 0.0
  %165 = vadd.xlane.f32.xlu0 %v164
  %v166 = vpop.xlane.xlu0 %165
  %v167 = vsel %vm40, %v126, 0.0
  %168 = vadd.xlane.f32.xlu0 %v167
  %v169 = vpop.xlane.xlu0 %168
  %v170 = vsel %vm40, %v128, 0.0
  %171 = vadd.xlane.f32.xlu0 %v170
  %v172 = vpop.xlane.xlu0 %171
  %v173 = vsel %vm40, %v130, 0.0
  %174 = vadd.xlane.f32.xlu0 %v173
  %v175 = vpop.xlane.xlu0 %174
  %v176 = vsel %vm40, %v132, 0.0
  %177 = vadd.xlane.f32.xlu0 %v176
  %v178 = vpop.xlane.xlu0 %177
  %v179 = vsel %vm40, %v134, 0.0
  %180 = vadd.xlane.f32.xlu0 %v179
  %v181 = vpop.xlane.xlu0 %180
  %v182 = vsel %vm40, %v136, 0.0
  %183 = vadd.xlane.f32.xlu0 %v182
  %v184 = vpop.xlane.xlu0 %183
  %v185 = vrcp.pop %v139
  %v186 = vrcp.pop %v142
  %v187 = vrcp.pop %v145
  %v188 = vrcp.pop %v148
  %v189 = vrcp.pop %v151
  %v190 = vrcp.pop %v154
  %v191 = vrcp.pop %v157
  %v192 = vrcp.pop %v160
  %v193 = vrcp.pop %v163
  %v194 = vrcp.pop %v166
  %v195 = vrcp.pop %v169
  %v196 = vrcp.pop %v172
  %v197 = vrcp.pop %v175
  %v198 = vrcp.pop %v178
  %v199 = vrcp.pop %v181
  %v200 = vrcp.pop %v184
  %v201 = vmul.f32 %v139, %v185
  %v202 = vmul.f32 %v142, %v186
  %v203 = vmul.f32 %v145, %v187
  %v204 = vmul.f32 %v148, %v188
  %v205 = vmul.f32 %v151, %v189
  %v206 = vmul.f32 %v154, %v190
  %v207 = vmul.f32 %v157, %v191
  %v208 = vmul.f32 %v160, %v192
  %v209 = vmul.f32 %v163, %v193
  %v210 = vmul.f32 %v166, %v194
  %v211 = vmul.f32 %v169, %v195
  %v212 = vmul.f32 %v172, %v196
  %v213 = vmul.f32 %v175, %v197
  %v214 = vmul.f32 %v178, %v198
  %v215 = vmul.f32 %v181, %v199
  %v216 = vmul.f32 %v184, %v200
  %v217 = vsub.f32 2.0, %v201
  %v218 = vsub.f32 2.0, %v202
  %v219 = vsub.f32 2.0, %v203
  %v220 = vsub.f32 2.0, %v204
  %v221 = vsub.f32 2.0, %v205
  %v222 = vsub.f32 2.0, %v206
  %v223 = vsub.f32 2.0, %v207
  %v224 = vsub.f32 2.0, %v208
  %v225 = vsub.f32 2.0, %v209
  %v226 = vsub.f32 2.0, %v210
  %v227 = vsub.f32 2.0, %v211
  %v228 = vsub.f32 2.0, %v212
  %v229 = vsub.f32 2.0, %v213
  %v230 = vsub.f32 2.0, %v214
  %v231 = vsub.f32 2.0, %v215
  %v232 = vsub.f32 2.0, %v216
  %v233 = vmul.f32 %v185, %v217
  %v234 = vmul.f32 %v186, %v218
  %v235 = vmul.f32 %v187, %v219
  %v236 = vmul.f32 %v188, %v220
  %v237 = vmul.f32 %v189, %v221
  %v238 = vmul.f32 %v190, %v222
  %v239 = vmul.f32 %v191, %v223
  %v240 = vmul.f32 %v192, %v224
  %v241 = vmul.f32 %v193, %v225
  %v242 = vmul.f32 %v194, %v226
  %v243 = vmul.f32 %v195, %v227
  %v244 = vmul.f32 %v196, %v228
  %v245 = vmul.f32 %v197, %v229
  %v246 = vmul.f32 %v198, %v230
  %v247 = vmul.f32 %v199, %v231
  %v248 = vmul.f32 %v200, %v232
  %v249 = vmul.f32 %v106, %v233
  %v250 = vmul.f32 %v108, %v234
  %v251 = vmul.f32 %v110, %v235
  %v252 = vmul.f32 %v112, %v236
  %v253 = vmul.f32 %v114, %v237
  %v254 = vmul.f32 %v116, %v238
  %v255 = vmul.f32 %v118, %v239
  %v256 = vmul.f32 %v120, %v240
  %v257 = vmul.f32 %v122, %v241
  %v258 = vmul.f32 %v124, %v242
  %v259 = vmul.f32 %v126, %v243
  %v260 = vmul.f32 %v128, %v244
  %v261 = vmul.f32 %v130, %v245
  %v262 = vmul.f32 %v132, %v246
  %v263 = vmul.f32 %v134, %v247
  %v264 = vmul.f32 %v136, %v248
  %265 = vst.msk [vmem:[%s1] sm:$0xff] %vm40, %v249
  %266 = vst.msk [vmem:[%s1 + $0x8] sm:$0xff] %vm40, %v250
  %267 = vst.msk [vmem:[%s1 + $0x10] sm:$0xff] %vm40, %v251
  %268 = vst.msk [vmem:[%s1 + $0x18] sm:$0xff] %vm40, %v252
  %269 = vst.msk [vmem:[%s1 + $0x20] sm:$0xff] %vm40, %v253
  %270 = vst.msk [vmem:[%s1 + $0x28] sm:$0xff] %vm40, %v254
  %271 = vst.msk [vmem:[%s1 + $0x30] sm:$0xff] %vm40, %v255
  %272 = vst.msk [vmem:[%s1 + $0x38] sm:$0xff] %vm40, %v256
  %273 = vst.msk [vmem:[%s1 + $0x40] sm:$0xff] %vm40, %v257
  %274 = vst.msk [vmem:[%s1 + $0x48] sm:$0xff] %vm40, %v258
  %275 = vst.msk [vmem:[%s1 + $0x50] sm:$0xff] %vm40, %v259
  %276 = vst.msk [vmem:[%s1 + $0x58] sm:$0xff] %vm40, %v260
  %277 = vst.msk [vmem:[%s1 + $0x60] sm:$0xff] %vm40, %v261
  %278 = vst.msk [vmem:[%s1 + $0x68] sm:$0xff] %vm40, %v262
  %279 = vst.msk [vmem:[%s1 + $0x70] sm:$0xff] %vm40, %v263
  %280 = vst.msk [vmem:[%s1 + $0x78] sm:$0xff] %vm40, %v264
  // Predicated region
  $region6: #{tpu_custom_call.1} parent=0 // pred_check
    _
  $region7: #{tpu_custom_call.1} parent=0 // pred_check_branch
    %282 = sbr.rel (0) target = $region9
  $region8: #{tpu_custom_call.1} parent=0 // pred_region
    _
  $region9: #{tpu_custom_call.1} parent=0 // pred_fallthru
    _
  // Predicated region
  $region10: #{tpu_custom_call.1} parent=0 // pred_check
    _
  $region11: #{tpu_custom_call.1} parent=0 // pred_check_branch
    %284 = sbr.rel (0) target = $region13
  $region12: #{tpu_custom_call.1} parent=0 // pred_region
    _
  $region13: #{tpu_custom_call.1} parent=0 // pred_fallthru
    _

</llo_original>
